<compile_context>
chip_gen: v5e
topology: v5e:2x2
jax: 0.10.0
libtpu: 0.0.40
codegen_flags: <defaults>
</compile_context>

<pallas_src>
import functools

import jax
import jax.numpy as jnp
from jax import lax
from jax.experimental import pallas as pl
from jax.experimental.pallas import tpu as pltpu


def tan_kernel(doc_ref,                       # (Tc*Bp, E)   bf16, time chunk
               wih_ref,                       # (E, 2H)      bf16, [W_ih_f|W_ih_b]
               whh_ref,                       # (2H, 2H)     bf16, block-diag
               b_ref,                         # (1, 2H)      f32,  [b_f|b_b]
               wcls_ref,                      # (2H, C)      bf16
               bcls_ref,                      # (1, C)       f32
               out_ref,                       # (Bp, C)      f32
               x_ref,                         # (Lp*Bp, 2H)  f32 scratch
               *, L, Bp, Tc, H, unroll):
    t = pl.program_id(0)

    # ---- projection phase (every grid step): one (Tc*Bp,E)x(E,2H) MXU pass --
    proj = (jnp.dot(doc_ref[...], wih_ref[...],
                    preferred_element_type=jnp.float32) + b_ref[...])
    off = pl.multiple_of(t * (Tc * Bp), Tc * Bp)
    x_ref[pl.ds(off, Tc * Bp), :] = proj

    # ---- last grid step: fused bidirectional recurrence + classifier --------
    @pl.when(t == pl.num_programs(0) - 1)
    def _():
        whh = whh_ref[...]                                  # (2H, 2H) bf16
        # Hoisted lane mask (JAX does not CSE broadcast_in_dim inside loops).
        lane = lax.broadcasted_iota(jnp.int32, (Bp, 2 * H), 1)
        is_fwd_lane = lane < H

        h0 = jnp.zeros((Bp, 2 * H), jnp.float32)
        acc0 = jnp.zeros((Bp, 2 * H), jnp.float32)

        def step(i, carry):
            h, acc = carry
            off_f = pl.multiple_of(i * Bp, Bp)              # fwd reads time i
            off_b = pl.multiple_of((L - 1 - i) * Bp, Bp)    # bwd reads L-1-i
            row_f = x_ref[pl.ds(off_f, Bp), :]              # (Bp, 2H) f32
            row_b = x_ref[pl.ds(off_b, Bp), :]
            x = jnp.where(is_fwd_lane, row_f, row_b)        # [xf_i | xb_{L-1-i}]
            h = jnp.tanh(x + jnp.dot(h.astype(jnp.bfloat16), whh,
                                     preferred_element_type=jnp.float32))
            return h, acc + h                               # pooled == sum_t h_t

        _, pooled = lax.fori_loop(0, L, step, (h0, acc0), unroll=unroll)

        # nn.Dropout(0.1) on the RNN output is identity at inference time.
        out_ref[...] = (jnp.dot(pooled.astype(jnp.bfloat16), wcls_ref[...],
                                preferred_element_type=jnp.float32)
                        + bcls_ref[...])


def tan_forward(input_ids, target_ids, params, *, time_chunk=64):
    """Pallas-backed TAN forward. Returns (logits, None) like the torch module."""
    emb = params["embedding"]                               # (V, E)
    B, L = input_ids.shape
    E = emb.shape[1]
    H = params["w_hh_f"].shape[0]
    C = params["b_cls"].shape[1]

    # Target / attention branch: F.softmax over the size-1 last dim of
    # context_emb is identically 1.0, so target_ids, w_lin and b_lin cannot
    # affect the logits -- skip gathering / DMA'ing them entirely.
    del target_ids

    # Padding: batch to a sublane multiple (8); time to a multiple of the
    # chunk size.  Ids are padded BEFORE the gather (no extra HBM pass over
    # the embedded floats); padded rows/steps are never read by the recurrence.
    Bp = ((B + 7) // 8) * 8
    Tc = min(time_chunk, L)
    Lp = -(-L // Tc) * Tc
    ids_t = jnp.transpose(input_ids)                        # (L, B) time-major
    ids_t = jnp.pad(ids_t, ((0, Lp - L), (0, Bp - B)))      # (Lp, Bp)
    doc2d = jnp.take(emb, ids_t, axis=0).astype(jnp.bfloat16).reshape(Lp * Bp, E)

    # Weight packing (bf16 at the MXU inputs, biases stay f32).
    w_ih = jnp.concatenate([params["w_ih_f"], params["w_ih_b"]],
                           axis=1).astype(jnp.bfloat16)     # (E, 2H)
    b_ih = jnp.concatenate([params["b_f"], params["b_b"]], axis=1)  # (1, 2H) f32
    zhh = jnp.zeros((H, H), jnp.float32)
    w_hh = jnp.block([[params["w_hh_f"], zhh],
                      [zhh, params["w_hh_b"]]]).astype(jnp.bfloat16)  # (2H, 2H)
    w_cls = jnp.concatenate([params["w_cls_f"], params["w_cls_b"]],
                            axis=0).astype(jnp.bfloat16)    # (2H, C)
    b_cls = params["b_cls"].astype(jnp.float32)             # (1, C)

    # VMEM budget: doc chunk (double-buffered) + projection scratch + weights.
    # Never request the full 64 MiB per-TC VMEM of v7x.
    needed = (2 * Tc * Bp * E * 2                 # doc chunk, bf16, 2 buffers
              + Lp * Bp * 2 * H * 4               # projection scratch, f32
              + (E * 2 * H + 4 * H * H + 2 * H * C) * 2   # bf16 weights
              + (2 * H + C) * 4 + Bp * C * 4)
    vmem_limit = min(max(2 * needed, 16 * 1024 * 1024), 48 * 1024 * 1024)

    kernel = functools.partial(tan_kernel, L=L, Bp=Bp, Tc=Tc, H=H,
                               unroll=min(L, 8))
    logits_p = pl.pallas_call(
        kernel,
        out_shape=jax.ShapeDtypeStruct((Bp, C), jnp.float32),
        grid=(Lp // Tc,),
        in_specs=[
            pl.BlockSpec((Tc * Bp, E), lambda t: (t, 0)),       # streamed doc
            pl.BlockSpec((E, 2 * H), lambda t: (0, 0)),
            pl.BlockSpec((2 * H, 2 * H), lambda t: (0, 0)),
            pl.BlockSpec((1, 2 * H), lambda t: (0, 0)),
            pl.BlockSpec((2 * H, C), lambda t: (0, 0)),
            pl.BlockSpec((1, C), lambda t: (0, 0)),
        ],
        out_specs=pl.BlockSpec((Bp, C), lambda t: (0, 0)),
        scratch_shapes=[pltpu.VMEM((Lp * Bp, 2 * H), jnp.float32)],
        compiler_params=pltpu.CompilerParams(
            dimension_semantics=("arbitrary",),
            vmem_limit_bytes=vmem_limit),
    )(doc2d, w_ih, w_hh, b_ih, w_cls, b_cls)
    return logits_p[:B], None


def tan_reference(input_ids, target_ids, params):
    """Pure-JAX f32 mirror of the torch forward (full attention path)."""
    emb = params["embedding"]
    doc = jnp.take(emb, input_ids, axis=0).astype(jnp.float32)     # (B, Ld, E)
    tgt = jnp.take(emb, target_ids, axis=0).astype(jnp.float32)    # (B, Lt, E)
    B, Ld, E = doc.shape
    H = params["w_hh_f"].shape[0]

    def rnn_dir(x, w_ih, w_hh, b):
        def step(h, x_t):
            h_new = jnp.tanh(x_t @ w_ih + h @ w_hh + b)
            return h_new, h_new
        _, hs = lax.scan(step, jnp.zeros((B, H), jnp.float32),
                         jnp.transpose(x, (1, 0, 2)))
        return jnp.transpose(hs, (1, 0, 2))                        # (B, Ld, H)

    hf = rnn_dir(doc, params["w_ih_f"], params["w_hh_f"], params["b_f"])
    hb = rnn_dir(doc[:, ::-1, :], params["w_ih_b"], params["w_hh_b"],
                 params["b_b"])[:, ::-1, :]
    last_hidden = jnp.concatenate([hf, hb], axis=-1)               # (B, Ld, 2H)

    tgt_mean = jnp.mean(tgt, axis=1, keepdims=True)                # (B, 1, E)
    tgt_exp = jnp.broadcast_to(tgt_mean, (B, Ld, E))
    aug = jnp.concatenate([doc, tgt_exp], axis=-1)                 # (B, Ld, 2E)
    w_lin = jnp.concatenate([params["w_lin_d"], params["w_lin_t"]], axis=1)
    ctx = aug @ w_lin.T + params["b_lin"]                          # (B, Ld, 1)
    score = jax.nn.softmax(ctx, axis=-1)                           # == 1.0
    pooled = jnp.sum(last_hidden * score, axis=1)                  # (B, 2H)
    w_cls = jnp.concatenate([params["w_cls_f"], params["w_cls_b"]], axis=0)
    return pooled @ w_cls + params["b_cls"]


def make_params(key, vocab, emb_dim, hidden, num_labels):
    # TODO(synk): the original module loads GloVe embeddings from a pickle;
    # they are synthesized deterministically here instead.
    ks = jax.random.split(key, 12)
    s = 0.1
    return {
        "embedding": jax.random.normal(ks[0], (vocab, emb_dim), jnp.float32) * s,
        "w_ih_f": jax.random.normal(ks[1], (emb_dim, hidden), jnp.float32) * s,
        "w_hh_f": jax.random.normal(ks[2], (hidden, hidden), jnp.float32) * s,
        "b_f":    jax.random.normal(ks[3], (1, hidden), jnp.float32) * s,
        "w_ih_b": jax.random.normal(ks[4], (emb_dim, hidden), jnp.float32) * s,
        "w_hh_b": jax.random.normal(ks[5], (hidden, hidden), jnp.float32) * s,
        "b_b":    jax.random.normal(ks[6], (1, hidden), jnp.float32) * s,
        "w_lin_d": jax.random.normal(ks[7], (1, emb_dim), jnp.float32) * s,
        "w_lin_t": jax.random.normal(ks[8], (1, emb_dim), jnp.float32) * s,
        "b_lin":   jnp.zeros((1, 1), jnp.float32),
        "w_cls_f": jax.random.normal(ks[9], (hidden, num_labels), jnp.float32) * s,
        "w_cls_b": jax.random.normal(ks[10], (hidden, num_labels), jnp.float32) * s,
        "b_cls":   jax.random.normal(ks[11], (1, num_labels), jnp.float32) * s,
    }


if __name__ == "__main__":
    VOCAB, EMB, HIDDEN, NUM_LABELS = 50, 32, 32, 3
    B, L_DOC, L_TGT = 2, 8, 4

    key = jax.random.PRNGKey(0)
    k_par, k_doc, k_tgt = jax.random.split(key, 3)
    params = make_params(k_par, VOCAB, EMB, HIDDEN, NUM_LABELS)
    input_ids = jax.random.randint(k_doc, (B, L_DOC), 0, VOCAB)
    target_ids = jax.random.randint(k_tgt, (B, L_TGT), 0, VOCAB)

    # time_chunk=4 -> grid of 2 chunks, exercising the streamed/pipelined path.
    logits, _ = tan_forward(input_ids, target_ids, params, time_chunk=4)
    logits = jax.block_until_ready(logits)

    ref = jax.block_until_ready(tan_reference(input_ids, target_ids, params))
    err = float(jnp.max(jnp.abs(logits - ref)))
    assert logits.shape == (B, NUM_LABELS), logits.shape
    # bf16 MXU inputs vs the f32 reference -> loosened tolerance.
    assert err < 2e-2, f"mismatch vs reference: {err}"
    print("KERNEL_OK")
</pallas_src>

<mosaic_0001>
module attributes {stable_mosaic.version = 11 : i64} {
  func.func @tan_kernel(%arg0: i32, %arg1: memref<32x32xbf16, #tpu.memory_space<vmem>>, %arg2: memref<32x64xbf16, #tpu.memory_space<vmem>>, %arg3: memref<64x64xbf16, #tpu.memory_space<vmem>>, %arg4: memref<1x64xf32, #tpu.memory_space<vmem>>, %arg5: memref<64x3xbf16, #tpu.memory_space<vmem>>, %arg6: memref<1x3xf32, #tpu.memory_space<vmem>>, %arg7: memref<8x3xf32, #tpu.memory_space<vmem>>, %arg8: memref<64x64xf32, #tpu.memory_space<vmem>>) attributes {dimension_semantics = [#tpu.dimension_semantics<arbitrary>], iteration_bounds = array<i64: 2>, scalar_prefetch = 0 : i64, scratch_operands = 1 : i64, tpu.core_type = #tpu.core_type<tc>, window_params = [{transform_indices = @transform_0, window_bounds = array<i64: 32, 32>}, {pipeline_mode = #tpu.pipeline_mode<synchronous>, transform_indices = @transform_1, window_bounds = array<i64: 32, 64>}, {pipeline_mode = #tpu.pipeline_mode<synchronous>, transform_indices = @transform_2, window_bounds = array<i64: 64, 64>}, {pipeline_mode = #tpu.pipeline_mode<synchronous>, transform_indices = @transform_3, window_bounds = array<i64: 1, 64>}, {pipeline_mode = #tpu.pipeline_mode<synchronous>, transform_indices = @transform_4, window_bounds = array<i64: 64, 3>}, {pipeline_mode = #tpu.pipeline_mode<synchronous>, transform_indices = @transform_5, window_bounds = array<i64: 1, 3>}, {pipeline_mode = #tpu.pipeline_mode<synchronous>, transform_indices = @transform_6, window_bounds = array<i64: 8, 3>}]} {
    %c0 = arith.constant 0 : index
    %c0_0 = arith.constant 0 : index
    %0 = vector.load %arg1[%c0, %c0_0] : memref<32x32xbf16, #tpu.memory_space<vmem>>, vector<32x32xbf16>
    %c0_1 = arith.constant 0 : index
    %c0_2 = arith.constant 0 : index
    %1 = vector.load %arg2[%c0_1, %c0_2] : memref<32x64xbf16, #tpu.memory_space<vmem>>, vector<32x64xbf16>
    %cst = arith.constant dense<0.000000e+00> : vector<32x64xf32>
    %2 = tpu.matmul %0, %1, %cst {dimension_numbers = #tpu.dot_dimension_numbers<[1], [0], [0], [1], [0, 0, 1, 1], [], []>} : vector<32x32xbf16>, vector<32x64xbf16>, vector<32x64xf32> -> vector<32x64xf32>
    %c0_3 = arith.constant 0 : index
    %c0_4 = arith.constant 0 : index
    %3 = vector.load %arg4[%c0_3, %c0_4] : memref<1x64xf32, #tpu.memory_space<vmem>>, vector<1x64xf32>
    %4 = vector.broadcast %3 : vector<1x64xf32> to vector<32x64xf32>
    %5 = arith.addf %2, %4 : vector<32x64xf32>
    %c32_i32 = arith.constant 32 : i32
    %6 = arith.muli %arg0, %c32_i32 : i32
    %7 = tpu.assume_multiple %6, 32 : i32
    %8 = arith.index_cast %7 : i32 to index
    %c0_5 = arith.constant 0 : index
    %9 = vector.load %arg8[%8, %c0_5] : memref<64x64xf32, #tpu.memory_space<vmem>>, vector<32x64xf32>
    tpu.vector_store %arg8[%8, %c0_5], %5 {strides = array<i32>} : memref<64x64xf32, #tpu.memory_space<vmem>>, vector<32x64xf32>,
    %c1_i32 = arith.constant 1 : i32
    %10 = arith.cmpi eq, %arg0, %c1_i32 : i32
    %11 = arith.extui %10 : i1 to i32
    %c0_i32 = arith.constant 0 : i32
    %12 = arith.cmpi ne, %11, %c0_i32 : i32
    scf.if %12 {
      %c0_6 = arith.constant 0 : index
      %c0_7 = arith.constant 0 : index
      %13 = vector.load %arg3[%c0_6, %c0_7] : memref<64x64xbf16, #tpu.memory_space<vmem>>, vector<64x64xbf16>
      %14 = tpu.iota {dimensions = array<i32: 1>} : vector<8x64xi32>
      %c32_i32_8 = arith.constant 32 : i32
      %15 = vector.broadcast %c32_i32_8 : i32 to vector<8x64xi32>
      %16 = arith.cmpi slt, %14, %15 : vector<8x64xi32>
      %cst_9 = arith.constant 0.000000e+00 : f32
      %17 = vector.broadcast %cst_9 : f32 to vector<8x64xf32>
      %cst_10 = arith.constant 0.000000e+00 : f32
      %18 = vector.broadcast %cst_10 : f32 to vector<8x64xf32>
      %c0_i32_11 = arith.constant 0 : i32
      %c8_i32 = arith.constant 8 : i32
      %19 = arith.muli %c0_i32_11, %c8_i32 : i32
      %20 = tpu.assume_multiple %19, 8 : i32
      %c7_i32 = arith.constant 7 : i32
      %21 = arith.subi %c7_i32, %c0_i32_11 : i32
      %c8_i32_12 = arith.constant 8 : i32
      %22 = arith.muli %21, %c8_i32_12 : i32
      %23 = tpu.assume_multiple %22, 8 : i32
      %24 = arith.index_cast %20 : i32 to index
      %c0_13 = arith.constant 0 : index
      %25 = vector.load %arg8[%24, %c0_13] : memref<64x64xf32, #tpu.memory_space<vmem>>, vector<8x64xf32>
      %26 = arith.index_cast %23 : i32 to index
      %c0_14 = arith.constant 0 : index
      %27 = vector.load %arg8[%26, %c0_14] : memref<64x64xf32, #tpu.memory_space<vmem>>, vector<8x64xf32>
      %28 = arith.select %16, %25, %27 : vector<8x64xi1>, vector<8x64xf32>
      %29 = arith.truncf %17 : vector<8x64xf32> to vector<8x64xbf16>
      %cst_15 = arith.constant dense<0.000000e+00> : vector<8x64xf32>
      %30 = tpu.matmul %29, %13, %cst_15 {dimension_numbers = #tpu.dot_dimension_numbers<[1], [0], [0], [1], [0, 0, 1, 1], [], []>} : vector<8x64xbf16>, vector<64x64xbf16>, vector<8x64xf32> -> vector<8x64xf32>
      %31 = arith.addf %28, %30 : vector<8x64xf32>
      %32 = math.tanh %31 : vector<8x64xf32>
      %33 = arith.addf %18, %32 : vector<8x64xf32>
      %c1_i32_16 = arith.constant 1 : i32
      %c8_i32_17 = arith.constant 8 : i32
      %34 = arith.muli %c1_i32_16, %c8_i32_17 : i32
      %35 = tpu.assume_multiple %34, 8 : i32
      %c7_i32_18 = arith.constant 7 : i32
      %36 = arith.subi %c7_i32_18, %c1_i32_16 : i32
      %c8_i32_19 = arith.constant 8 : i32
      %37 = arith.muli %36, %c8_i32_19 : i32
      %38 = tpu.assume_multiple %37, 8 : i32
      %39 = arith.index_cast %35 : i32 to index
      %c0_20 = arith.constant 0 : index
      %40 = vector.load %arg8[%39, %c0_20] : memref<64x64xf32, #tpu.memory_space<vmem>>, vector<8x64xf32>
      %41 = arith.index_cast %38 : i32 to index
      %c0_21 = arith.constant 0 : index
      %42 = vector.load %arg8[%41, %c0_21] : memref<64x64xf32, #tpu.memory_space<vmem>>, vector<8x64xf32>
      %43 = arith.select %16, %40, %42 : vector<8x64xi1>, vector<8x64xf32>
      %44 = arith.truncf %32 : vector<8x64xf32> to vector<8x64xbf16>
      %cst_22 = arith.constant dense<0.000000e+00> : vector<8x64xf32>
      %45 = tpu.matmul %44, %13, %cst_22 {dimension_numbers = #tpu.dot_dimension_numbers<[1], [0], [0], [1], [0, 0, 1, 1], [], []>} : vector<8x64xbf16>, vector<64x64xbf16>, vector<8x64xf32> -> vector<8x64xf32>
      %46 = arith.addf %43, %45 : vector<8x64xf32>
      %47 = math.tanh %46 : vector<8x64xf32>
      %48 = arith.addf %33, %47 : vector<8x64xf32>
      %c2_i32 = arith.constant 2 : i32
      %c8_i32_23 = arith.constant 8 : i32
      %49 = arith.muli %c2_i32, %c8_i32_23 : i32
      %50 = tpu.assume_multiple %49, 8 : i32
      %c7_i32_24 = arith.constant 7 : i32
      %51 = arith.subi %c7_i32_24, %c2_i32 : i32
      %c8_i32_25 = arith.constant 8 : i32
      %52 = arith.muli %51, %c8_i32_25 : i32
      %53 = tpu.assume_multiple %52, 8 : i32
      %54 = arith.index_cast %50 : i32 to index
      %c0_26 = arith.constant 0 : index
      %55 = vector.load %arg8[%54, %c0_26] : memref<64x64xf32, #tpu.memory_space<vmem>>, vector<8x64xf32>
      %56 = arith.index_cast %53 : i32 to index
      %c0_27 = arith.constant 0 : index
      %57 = vector.load %arg8[%56, %c0_27] : memref<64x64xf32, #tpu.memory_space<vmem>>, vector<8x64xf32>
      %58 = arith.select %16, %55, %57 : vector<8x64xi1>, vector<8x64xf32>
      %59 = arith.truncf %47 : vector<8x64xf32> to vector<8x64xbf16>
      %cst_28 = arith.constant dense<0.000000e+00> : vector<8x64xf32>
      %60 = tpu.matmul %59, %13, %cst_28 {dimension_numbers = #tpu.dot_dimension_numbers<[1], [0], [0], [1], [0, 0, 1, 1], [], []>} : vector<8x64xbf16>, vector<64x64xbf16>, vector<8x64xf32> -> vector<8x64xf32>
      %61 = arith.addf %58, %60 : vector<8x64xf32>
      %62 = math.tanh %61 : vector<8x64xf32>
      %63 = arith.addf %48, %62 : vector<8x64xf32>
      %c3_i32 = arith.constant 3 : i32
      %c8_i32_29 = arith.constant 8 : i32
      %64 = arith.muli %c3_i32, %c8_i32_29 : i32
      %65 = tpu.assume_multiple %64, 8 : i32
      %c7_i32_30 = arith.constant 7 : i32
      %66 = arith.subi %c7_i32_30, %c3_i32 : i32
      %c8_i32_31 = arith.constant 8 : i32
      %67 = arith.muli %66, %c8_i32_31 : i32
      %68 = tpu.assume_multiple %67, 8 : i32
      %69 = arith.index_cast %65 : i32 to index
      %c0_32 = arith.constant 0 : index
      %70 = vector.load %arg8[%69, %c0_32] : memref<64x64xf32, #tpu.memory_space<vmem>>, vector<8x64xf32>
      %71 = arith.index_cast %68 : i32 to index
      %c0_33 = arith.constant 0 : index
      %72 = vector.load %arg8[%71, %c0_33] : memref<64x64xf32, #tpu.memory_space<vmem>>, vector<8x64xf32>
      %73 = arith.select %16, %70, %72 : vector<8x64xi1>, vector<8x64xf32>
      %74 = arith.truncf %62 : vector<8x64xf32> to vector<8x64xbf16>
      %cst_34 = arith.constant dense<0.000000e+00> : vector<8x64xf32>
      %75 = tpu.matmul %74, %13, %cst_34 {dimension_numbers = #tpu.dot_dimension_numbers<[1], [0], [0], [1], [0, 0, 1, 1], [], []>} : vector<8x64xbf16>, vector<64x64xbf16>, vector<8x64xf32> -> vector<8x64xf32>
      %76 = arith.addf %73, %75 : vector<8x64xf32>
      %77 = math.tanh %76 : vector<8x64xf32>
      %78 = arith.addf %63, %77 : vector<8x64xf32>
      %c4_i32 = arith.constant 4 : i32
      %c8_i32_35 = arith.constant 8 : i32
      %79 = arith.muli %c4_i32, %c8_i32_35 : i32
      %80 = tpu.assume_multiple %79, 8 : i32
      %c7_i32_36 = arith.constant 7 : i32
      %81 = arith.subi %c7_i32_36, %c4_i32 : i32
      %c8_i32_37 = arith.constant 8 : i32
      %82 = arith.muli %81, %c8_i32_37 : i32
      %83 = tpu.assume_multiple %82, 8 : i32
      %84 = arith.index_cast %80 : i32 to index
      %c0_38 = arith.constant 0 : index
      %85 = vector.load %arg8[%84, %c0_38] : memref<64x64xf32, #tpu.memory_space<vmem>>, vector<8x64xf32>
      %86 = arith.index_cast %83 : i32 to index
      %c0_39 = arith.constant 0 : index
      %87 = vector.load %arg8[%86, %c0_39] : memref<64x64xf32, #tpu.memory_space<vmem>>, vector<8x64xf32>
      %88 = arith.select %16, %85, %87 : vector<8x64xi1>, vector<8x64xf32>
      %89 = arith.truncf %77 : vector<8x64xf32> to vector<8x64xbf16>
      %cst_40 = arith.constant dense<0.000000e+00> : vector<8x64xf32>
      %90 = tpu.matmul %89, %13, %cst_40 {dimension_numbers = #tpu.dot_dimension_numbers<[1], [0], [0], [1], [0, 0, 1, 1], [], []>} : vector<8x64xbf16>, vector<64x64xbf16>, vector<8x64xf32> -> vector<8x64xf32>
      %91 = arith.addf %88, %90 : vector<8x64xf32>
      %92 = math.tanh %91 : vector<8x64xf32>
      %93 = arith.addf %78, %92 : vector<8x64xf32>
      %c5_i32 = arith.constant 5 : i32
      %c8_i32_41 = arith.constant 8 : i32
      %94 = arith.muli %c5_i32, %c8_i32_41 : i32
      %95 = tpu.assume_multiple %94, 8 : i32
      %c7_i32_42 = arith.constant 7 : i32
      %96 = arith.subi %c7_i32_42, %c5_i32 : i32
      %c8_i32_43 = arith.constant 8 : i32
      %97 = arith.muli %96, %c8_i32_43 : i32
      %98 = tpu.assume_multiple %97, 8 : i32
      %99 = arith.index_cast %95 : i32 to index
      %c0_44 = arith.constant 0 : index
      %100 = vector.load %arg8[%99, %c0_44] : memref<64x64xf32, #tpu.memory_space<vmem>>, vector<8x64xf32>
      %101 = arith.index_cast %98 : i32 to index
      %c0_45 = arith.constant 0 : index
      %102 = vector.load %arg8[%101, %c0_45] : memref<64x64xf32, #tpu.memory_space<vmem>>, vector<8x64xf32>
      %103 = arith.select %16, %100, %102 : vector<8x64xi1>, vector<8x64xf32>
      %104 = arith.truncf %92 : vector<8x64xf32> to vector<8x64xbf16>
      %cst_46 = arith.constant dense<0.000000e+00> : vector<8x64xf32>
      %105 = tpu.matmul %104, %13, %cst_46 {dimension_numbers = #tpu.dot_dimension_numbers<[1], [0], [0], [1], [0, 0, 1, 1], [], []>} : vector<8x64xbf16>, vector<64x64xbf16>, vector<8x64xf32> -> vector<8x64xf32>
      %106 = arith.addf %103, %105 : vector<8x64xf32>
      %107 = math.tanh %106 : vector<8x64xf32>
      %108 = arith.addf %93, %107 : vector<8x64xf32>
      %c6_i32 = arith.constant 6 : i32
      %c8_i32_47 = arith.constant 8 : i32
      %109 = arith.muli %c6_i32, %c8_i32_47 : i32
      %110 = tpu.assume_multiple %109, 8 : i32
      %c7_i32_48 = arith.constant 7 : i32
      %111 = arith.subi %c7_i32_48, %c6_i32 : i32
      %c8_i32_49 = arith.constant 8 : i32
      %112 = arith.muli %111, %c8_i32_49 : i32
      %113 = tpu.assume_multiple %112, 8 : i32
      %114 = arith.index_cast %110 : i32 to index
      %c0_50 = arith.constant 0 : index
      %115 = vector.load %arg8[%114, %c0_50] : memref<64x64xf32, #tpu.memory_space<vmem>>, vector<8x64xf32>
      %116 = arith.index_cast %113 : i32 to index
      %c0_51 = arith.constant 0 : index
      %117 = vector.load %arg8[%116, %c0_51] : memref<64x64xf32, #tpu.memory_space<vmem>>, vector<8x64xf32>
      %118 = arith.select %16, %115, %117 : vector<8x64xi1>, vector<8x64xf32>
      %119 = arith.truncf %107 : vector<8x64xf32> to vector<8x64xbf16>
      %cst_52 = arith.constant dense<0.000000e+00> : vector<8x64xf32>
      %120 = tpu.matmul %119, %13, %cst_52 {dimension_numbers = #tpu.dot_dimension_numbers<[1], [0], [0], [1], [0, 0, 1, 1], [], []>} : vector<8x64xbf16>, vector<64x64xbf16>, vector<8x64xf32> -> vector<8x64xf32>
      %121 = arith.addf %118, %120 : vector<8x64xf32>
      %122 = math.tanh %121 : vector<8x64xf32>
      %123 = arith.addf %108, %122 : vector<8x64xf32>
      %c7_i32_53 = arith.constant 7 : i32
      %c8_i32_54 = arith.constant 8 : i32
      %124 = arith.muli %c7_i32_53, %c8_i32_54 : i32
      %125 = tpu.assume_multiple %124, 8 : i32
      %c7_i32_55 = arith.constant 7 : i32
      %126 = arith.subi %c7_i32_55, %c7_i32_53 : i32
      %c8_i32_56 = arith.constant 8 : i32
      %127 = arith.muli %126, %c8_i32_56 : i32
      %128 = tpu.assume_multiple %127, 8 : i32
      %129 = arith.index_cast %125 : i32 to index
      %c0_57 = arith.constant 0 : index
      %130 = vector.load %arg8[%129, %c0_57] : memref<64x64xf32, #tpu.memory_space<vmem>>, vector<8x64xf32>
      %131 = arith.index_cast %128 : i32 to index
      %c0_58 = arith.constant 0 : index
      %132 = vector.load %arg8[%131, %c0_58] : memref<64x64xf32, #tpu.memory_space<vmem>>, vector<8x64xf32>
      %133 = arith.select %16, %130, %132 : vector<8x64xi1>, vector<8x64xf32>
      %134 = arith.truncf %122 : vector<8x64xf32> to vector<8x64xbf16>
      %cst_59 = arith.constant dense<0.000000e+00> : vector<8x64xf32>
      %135 = tpu.matmul %134, %13, %cst_59 {dimension_numbers = #tpu.dot_dimension_numbers<[1], [0], [0], [1], [0, 0, 1, 1], [], []>} : vector<8x64xbf16>, vector<64x64xbf16>, vector<8x64xf32> -> vector<8x64xf32>
      %136 = arith.addf %133, %135 : vector<8x64xf32>
      %137 = math.tanh %136 : vector<8x64xf32>
      %138 = arith.addf %123, %137 : vector<8x64xf32>
      %c8_i32_60 = arith.constant 8 : i32
      %139 = arith.truncf %138 : vector<8x64xf32> to vector<8x64xbf16>
      %c0_61 = arith.constant 0 : index
      %c0_62 = arith.constant 0 : index
      %140 = vector.load %arg5[%c0_61, %c0_62] : memref<64x3xbf16, #tpu.memory_space<vmem>>, vector<64x3xbf16>
      %cst_63 = arith.constant dense<0.000000e+00> : vector<8x3xf32>
      %141 = tpu.matmul %139, %140, %cst_63 {dimension_numbers = #tpu.dot_dimension_numbers<[1], [0], [0], [1], [0, 0, 1, 1], [], []>} : vector<8x64xbf16>, vector<64x3xbf16>, vector<8x3xf32> -> vector<8x3xf32>
      %c0_64 = arith.constant 0 : index
      %c0_65 = arith.constant 0 : index
      %142 = vector.load %arg6[%c0_64, %c0_65] : memref<1x3xf32, #tpu.memory_space<vmem>>, vector<1x3xf32>
      %143 = vector.broadcast %142 : vector<1x3xf32> to vector<8x3xf32>
      %144 = arith.addf %141, %143 : vector<8x3xf32>
      %c0_66 = arith.constant 0 : index
      %c0_67 = arith.constant 0 : index
      %145 = vector.load %arg7[%c0_66, %c0_67] : memref<8x3xf32, #tpu.memory_space<vmem>>, vector<8x3xf32>
      tpu.vector_store %arg7[%c0_66, %c0_67], %144 {strides = array<i32>} : memref<8x3xf32, #tpu.memory_space<vmem>>, vector<8x3xf32>,
    } else {
    }
    return
  }
  func.func @transform_0(%arg0: i32) -> (i32, i32) {
    %c0_i32 = arith.constant 0 : i32
    %c0_i32_0 = arith.constant 0 : i32
    return %arg0, %c0_i32 : i32, i32
  }
  func.func @transform_1(%arg0: i32) -> (i32, i32) {
    %c0_i32 = arith.constant 0 : i32
    %c0_i32_0 = arith.constant 0 : i32
    %c0_i32_1 = arith.constant 0 : i32
    return %c0_i32, %c0_i32_0 : i32, i32
  }
  func.func @transform_2(%arg0: i32) -> (i32, i32) {
    %c0_i32 = arith.constant 0 : i32
    %c0_i32_0 = arith.constant 0 : i32
    %c0_i32_1 = arith.constant 0 : i32
    return %c0_i32, %c0_i32_0 : i32, i32
  }
  func.func @transform_3(%arg0: i32) -> (i32, i32) {
    %c0_i32 = arith.constant 0 : i32
    %c0_i32_0 = arith.constant 0 : i32
    %c0_i32_1 = arith.constant 0 : i32
    return %c0_i32, %c0_i32_0 : i32, i32
  }
  func.func @transform_4(%arg0: i32) -> (i32, i32) {
    %c0_i32 = arith.constant 0 : i32
    %c0_i32_0 = arith.constant 0 : i32
    %c0_i32_1 = arith.constant 0 : i32
    return %c0_i32, %c0_i32_0 : i32, i32
  }
  func.func @transform_5(%arg0: i32) -> (i32, i32) {
    %c0_i32 = arith.constant 0 : i32
    %c0_i32_0 = arith.constant 0 : i32
    %c0_i32_1 = arith.constant 0 : i32
    return %c0_i32, %c0_i32_0 : i32, i32
  }
  func.func @transform_6(%arg0: i32) -> (i32, i32) {
    %c0_i32 = arith.constant 0 : i32
    %c0_i32_0 = arith.constant 0 : i32
    %c0_i32_1 = arith.constant 0 : i32
    return %c0_i32, %c0_i32_0 : i32, i32
  }
}

</mosaic_0001>

<llo_original>
// kernel: tpu_custom_call.1
$region0: #{tpu_custom_call.1}
  #allocation0 [shape = 'u32[]', space=smem, size = 0x4, offset = 0x4, fixed_abs, tag = 'smem constant byte address 0x4 - core index']
  #allocation1 [shape = 'u32[72,128]{1,0:T(1,128)}', space=vmem, size = 0x9000, scoped, tag = 'internal scratch']
  #allocation2 [shape = 'f32[64,64]{1,0:T(8,128)}', space=vmem, size = 0x8000, scoped, tag = 'scratch operand']
  %s0 = inlined_call_operand.vmem [shape: bf16[64,32], index: 0, kind: input, shape index: {}]
  %s1 = inlined_call_operand.vmem [shape: bf16[32,64], index: 1, kind: input, shape index: {}]
  %s2 = inlined_call_operand.vmem [shape: bf16[64,64], index: 2, kind: input, shape index: {}]
  %s3 = inlined_call_operand.vmem [shape: f32[1,64], index: 3, kind: input, shape index: {}]
  %s4 = inlined_call_operand.vmem [shape: bf16[64,3], index: 4, kind: input, shape index: {}]
  %s5 = inlined_call_operand.vmem [shape: f32[1,3], index: 5, kind: input, shape index: {}]
  %s6 = inlined_call_operand.vmem [shape: f32[8,3], index: 6, kind: output, shape index: {}]
  %s7 = sld [smem:[#allocation0]]
  $region61: #{tpu_custom_call.1} parent=0
    _
  %s9 = ssub.s32 1, %s7
  %s10 = scalar_select 0, %s9, %s7
  loop: start=0, step=1, limit=4
  $region2: #{tpu_custom_call.1} parent=0 // loop_pre_header
    _
  $region3: #{tpu_custom_call.1} parent=0 // loop_header
    %s12 = sphi 0, %s16
    %p13 = scmp.ge.s32.totalorder %s12, 4
    %s22 = sphi 0, %s24
    %s25 = sphi 0, %s22
    %s26 = sphi 0, %s25
    %s42 = sphi 0, %s26
    %s46 = sphi 0, %s46
    %s48 = sphi 0, %s46
    %s49 = sphi 0, %s48
    %s63 = sphi 0, %s49
    %s67 = sphi 0, %s67
    %s69 = sphi 0, %s67
    %s70 = sphi 0, %s69
    %s84 = sphi 0, %s70
    %s88 = sphi 0, %s88
    %s90 = sphi 0, %s88
    %s91 = sphi 0, %s90
    %s105 = sphi 0, %s91
    %s109 = sphi 0, %s109
    %s111 = sphi 0, %s109
    %s112 = sphi 0, %s111
    %s126 = sphi 0, %s112
    %s130 = sphi 0, %s130
    %s132 = sphi 0, %s130
    %s133 = sphi 0, %s132
    %s147 = sphi 0, %s133
    %s151 = sphi 0, %s151
    %s153 = sphi 0, %s151
    %s154 = sphi 0, %s153
    %s168 = sphi 0, %s154
  $region4: #{tpu_custom_call.1} parent=0 // loop_header_branch
    %15 = sbr.rel (%p13) target = $region8
  $region5: #{tpu_custom_call.1} parent=0 // loop_body
    %s17 = ssub.s32 %s12, 1
    %s18 = ssub.s32 %s12, 2
    %s19 = sadd.s32 %s12, 1
    %s20 = ssub.s32 %s12, %s19
    %p21 = scmp.eq.s32.totalorder %s20, 0
    %s23 = sadd.s32 %s22, 1
    %s24 = scalar_select %p21, %s22, %s23
    %p27 = pneg %p21
    %p28 = scmp.eq.s32.totalorder %s12, 1
    %p29 = por %p27, %p28
    %p30 = scmp.ne.s32.totalorder %s22, %s25
    %p31 = scmp.eq.s32.totalorder %s12, 0
    %p32 = por %p30, %p31
    %p33 = scmp.ne.s32.totalorder %s22, %s25
    %p34 = scmp.eq.s32.totalorder %s17, 1
    %p35 = por %p33, %p34
    %p36 = scmp.ne.s32.totalorder %s25, %s26
    %p37 = scmp.eq.s32.totalorder %s17, 0
    %p38 = por %p36, %p37
    %p39 = scmp.ne.s32.totalorder %s25, %s26
    %p40 = scmp.eq.s32.totalorder %s18, 1
    %p41 = por %p39, %p40
    %p43 = scmp.ne.s32.totalorder %s26, %s42
    %p44 = scmp.eq.s32.totalorder %s18, 0
    %p45 = por %p43, %p44
    %s47 = sadd.s32 %s46, 1
    %p50 = scmp.eq.s32.totalorder %s12, 1
    %p51 = scmp.ne.s32.totalorder %s46, %s48
    %p52 = scmp.eq.s32.totalorder %s12, 0
    %p53 = por %p51, %p52
    %p54 = scmp.ne.s32.totalorder %s46, %s48
    %p55 = scmp.eq.s32.totalorder %s17, 1
    %p56 = por %p54, %p55
    %p57 = scmp.ne.s32.totalorder %s48, %s49
    %p58 = scmp.eq.s32.totalorder %s17, 0
    %p59 = por %p57, %p58
    %p60 = scmp.ne.s32.totalorder %s48, %s49
    %p61 = scmp.eq.s32.totalorder %s18, 1
    %p62 = por %p60, %p61
    %p64 = scmp.ne.s32.totalorder %s49, %s63
    %p65 = scmp.eq.s32.totalorder %s18, 0
    %p66 = por %p64, %p65
    %s68 = sadd.s32 %s67, 1
    %p71 = scmp.eq.s32.totalorder %s12, 1
    %p72 = scmp.ne.s32.totalorder %s67, %s69
    %p73 = scmp.eq.s32.totalorder %s12, 0
    %p74 = por %p72, %p73
    %p75 = scmp.ne.s32.totalorder %s67, %s69
    %p76 = scmp.eq.s32.totalorder %s17, 1
    %p77 = por %p75, %p76
    %p78 = scmp.ne.s32.totalorder %s69, %s70
    %p79 = scmp.eq.s32.totalorder %s17, 0
    %p80 = por %p78, %p79
    %p81 = scmp.ne.s32.totalorder %s69, %s70
    %p82 = scmp.eq.s32.totalorder %s18, 1
    %p83 = por %p81, %p82
    %p85 = scmp.ne.s32.totalorder %s70, %s84
    %p86 = scmp.eq.s32.totalorder %s18, 0
    %p87 = por %p85, %p86
    %s89 = sadd.s32 %s88, 1
    %p92 = scmp.eq.s32.totalorder %s12, 1
    %p93 = scmp.ne.s32.totalorder %s88, %s90
    %p94 = scmp.eq.s32.totalorder %s12, 0
    %p95 = por %p93, %p94
    %p96 = scmp.ne.s32.totalorder %s88, %s90
    %p97 = scmp.eq.s32.totalorder %s17, 1
    %p98 = por %p96, %p97
    %p99 = scmp.ne.s32.totalorder %s90, %s91
    %p100 = scmp.eq.s32.totalorder %s17, 0
    %p101 = por %p99, %p100
    %p102 = scmp.ne.s32.totalorder %s90, %s91
    %p103 = scmp.eq.s32.totalorder %s18, 1
    %p104 = por %p102, %p103
    %p106 = scmp.ne.s32.totalorder %s91, %s105
    %p107 = scmp.eq.s32.totalorder %s18, 0
    %p108 = por %p106, %p107
    %s110 = sadd.s32 %s109, 1
    %p113 = scmp.eq.s32.totalorder %s12, 1
    %p114 = scmp.ne.s32.totalorder %s109, %s111
    %p115 = scmp.eq.s32.totalorder %s12, 0
    %p116 = por %p114, %p115
    %p117 = scmp.ne.s32.totalorder %s109, %s111
    %p118 = scmp.eq.s32.totalorder %s17, 1
    %p119 = por %p117, %p118
    %p120 = scmp.ne.s32.totalorder %s111, %s112
    %p121 = scmp.eq.s32.totalorder %s17, 0
    %p122 = por %p120, %p121
    %p123 = scmp.ne.s32.totalorder %s111, %s112
    %p124 = scmp.eq.s32.totalorder %s18, 1
    %p125 = por %p123, %p124
    %p127 = scmp.ne.s32.totalorder %s112, %s126
    %p128 = scmp.eq.s32.totalorder %s18, 0
    %p129 = por %p127, %p128
    %s131 = sadd.s32 %s130, 1
    %p134 = scmp.eq.s32.totalorder %s12, 1
    %p135 = scmp.ne.s32.totalorder %s130, %s132
    %p136 = scmp.eq.s32.totalorder %s12, 0
    %p137 = por %p135, %p136
    %p138 = scmp.ne.s32.totalorder %s130, %s132
    %p139 = scmp.eq.s32.totalorder %s17, 1
    %p140 = por %p138, %p139
    %p141 = scmp.ne.s32.totalorder %s132, %s133
    %p142 = scmp.eq.s32.totalorder %s17, 0
    %p143 = por %p141, %p142
    %p144 = scmp.ne.s32.totalorder %s132, %s133
    %p145 = scmp.eq.s32.totalorder %s18, 1
    %p146 = por %p144, %p145
    %p148 = scmp.ne.s32.totalorder %s133, %s147
    %p149 = scmp.eq.s32.totalorder %s18, 0
    %p150 = por %p148, %p149
    %s152 = sadd.s32 %s151, 1
    %p155 = scmp.eq.s32.totalorder %s12, 1
    %p156 = scmp.ne.s32.totalorder %s151, %s153
    %p157 = scmp.eq.s32.totalorder %s12, 0
    %p158 = por %p156, %p157
    %p159 = scmp.ne.s32.totalorder %s151, %s153
    %p160 = scmp.eq.s32.totalorder %s17, 1
    %p161 = por %p159, %p160
    %p162 = scmp.ne.s32.totalorder %s153, %s154
    %p163 = scmp.eq.s32.totalorder %s17, 0
    %p164 = por %p162, %p163
    %p165 = scmp.ne.s32.totalorder %s153, %s154
    %p166 = scmp.eq.s32.totalorder %s18, 1
    %p167 = por %p165, %p166
    %p169 = scmp.ne.s32.totalorder %s154, %s168
    %p170 = scmp.eq.s32.totalorder %s18, 0
    %p171 = por %p169, %p170
    %p172 = scmp.le.s32.totalorder 1, %s12
    %p173 = scmp.lt.s32.totalorder %s12, 3
    %p174 = pnand %p172, %p173
    %p175 = pneg %p174
    // Predicated region
    $region9: #{tpu_custom_call.1} parent=5 // pred_check
      _
    $region10: #{tpu_custom_call.1} parent=5 // pred_check_branch
      %177 = sbr.rel (%p174) target = $region12
    $region11: #{tpu_custom_call.1} parent=5 // pred_region
      %s178 = ssub.s32 %s12, 1
      // Predicated region
      $region13: #{tpu_custom_call.1} parent=11 // pred_check
        %p179 = pneg %p59
      $region14: #{tpu_custom_call.1} parent=11 // pred_check_branch
        %181 = sbr.rel (%p179) target = $region16
      $region15: #{tpu_custom_call.1} parent=11 // pred_region
        _
      $region16: #{tpu_custom_call.1} parent=11 // pred_fallthru
        _
      // Predicated region
      $region17: #{tpu_custom_call.1} parent=11 // pred_check
        %p182 = pneg %p80
      $region18: #{tpu_custom_call.1} parent=11 // pred_check_branch
        %184 = sbr.rel (%p182) target = $region20
      $region19: #{tpu_custom_call.1} parent=11 // pred_region
        _
      $region20: #{tpu_custom_call.1} parent=11 // pred_fallthru
        _
      // Predicated region
      $region21: #{tpu_custom_call.1} parent=11 // pred_check
        %p185 = pneg %p101
      $region22: #{tpu_custom_call.1} parent=11 // pred_check_branch
        %187 = sbr.rel (%p185) target = $region24
      $region23: #{tpu_custom_call.1} parent=11 // pred_region
        _
      $region24: #{tpu_custom_call.1} parent=11 // pred_fallthru
        _
      // Predicated region
      $region25: #{tpu_custom_call.1} parent=11 // pred_check
        %p188 = pneg %p122
      $region26: #{tpu_custom_call.1} parent=11 // pred_check_branch
        %190 = sbr.rel (%p188) target = $region28
      $region27: #{tpu_custom_call.1} parent=11 // pred_region
        _
      $region28: #{tpu_custom_call.1} parent=11 // pred_fallthru
        _
      // Predicated region
      $region29: #{tpu_custom_call.1} parent=11 // pred_check
        %p191 = pneg %p143
      $region30: #{tpu_custom_call.1} parent=11 // pred_check_branch
        %193 = sbr.rel (%p191) target = $region32
      $region31: #{tpu_custom_call.1} parent=11 // pred_region
        _
      $region32: #{tpu_custom_call.1} parent=11 // pred_fallthru
        _
    $region12: #{tpu_custom_call.1} parent=5 // pred_fallthru
      _
    %p194 = scmp.lt.s32.totalorder %s12, 2
    // Predicated region
    $region33: #{tpu_custom_call.1} parent=5 // pred_check
      %p195 = pneg %p194
    $region34: #{tpu_custom_call.1} parent=5 // pred_check_branch
      %197 = sbr.rel (%p195) target = $region36
    $region35: #{tpu_custom_call.1} parent=5 // pred_region
      // Predicated region
      $region37: #{tpu_custom_call.1} parent=35 // pred_check
        %p198 = pneg %p32
      $region38: #{tpu_custom_call.1} parent=35 // pred_check_branch
        %200 = sbr.rel (%p198) target = $region40
      $region39: #{tpu_custom_call.1} parent=35 // pred_region
        %s201 = smul.u32 4, %s12
        %p202 = scmp.lt.s32.totalorder %s201, 7
        %s203 = scalar_select %p202, %s201, 7
        %s204 = smul.addr %s203, 4
        %s205 = scalar_lea.vmem %s0, %s204
        %s206 = smul.u32 4, %s12
      $region40: #{tpu_custom_call.1} parent=35 // pred_fallthru
        _
    $region36: #{tpu_custom_call.1} parent=5 // pred_fallthru
      _
    %p207 = scmp.le.s32.totalorder 1, %s12
    %p208 = scmp.lt.s32.totalorder %s12, 3
    %p209 = pnand %p207, %p208
    %p210 = pneg %p209
    // Predicated region
    $region41: #{tpu_custom_call.1} parent=5 // pred_check
      _
    $region42: #{tpu_custom_call.1} parent=5 // pred_check_branch
      %212 = sbr.rel (%p209) target = $region44
    $region43: #{tpu_custom_call.1} parent=5 // pred_region
      %s213 = ssub.s32 %s12, 1
      %s214 = smul.u32 4, %s17
      %p215 = scmp.lt.s32.totalorder %s214, 7
      %s216 = scalar_select %p215, %s214, 7
      %s217 = smul.addr %s216, 4
      %s218 = scalar_lea.vmem %s0, %s217
      %p219 = pneg %p38
      %p220 = pneg %p35
      %p221 = pneg %p59
      %p222 = pneg %p56
      %p223 = pneg %p80
      %p224 = pneg %p77
      %p225 = pneg %p101
      %p226 = pneg %p98
      %p227 = pneg %p122
      %p228 = pneg %p119
      %p229 = pneg %p143
      %p230 = pneg %p140
      %p231 = pneg %p164
      %p232 = pneg %p161
      %s233 = smul.u32 4, %s17
      %p234 = scmp.lt.s32.totalorder %s233, 7
      %s235 = scalar_select %p234, %s233, 7
      %s236 = smul.addr %s235, 4
      %s237 = scalar_lea.vmem %s0, %s236
      %s238 = smul.u32 4, %s17
      %v240 = vld [vmem:[%s237] sm:$0xf]
      %v241 = vld [vmem:[%s237 + $0x4] sm:$0xf]
      %v242 = vld [vmem:[%s237 + $0x8] sm:$0xf]
      %v243 = vld [vmem:[%s237 + $0xc] sm:$0xf]
      %v244 = vld [vmem:[%s1] sm:$0xf]
      %v245 = vld [vmem:[%s1 + $0x4] sm:$0xf]
      %v246 = vld [vmem:[%s1 + $0x8] sm:$0xf]
      %v247 = vld [vmem:[%s1 + $0xc] sm:$0xf]
      %v248 = vld [vmem:[%s3] sm:$0x1]
      %v250 = vperm.slane %v248, 0
      %v256 = vunpack.c.l.b16 %v240
      %v257 = vunpack.c.l.b16 %v241
      %v258 = vunpack.c.l.b16 %v242
      %v259 = vunpack.c.l.b16 %v243
      %v260 = vpack.c.b16 %v257, %v256
      %v261 = vpack.c.b16 %v259, %v258
      %v266 = vunpack.c.l.b16 %v244
      %v267 = vunpack.c.l.b16 %v245
      %v268 = vunpack.c.l.b16 %v246
      %v269 = vunpack.c.l.b16 %v247
      %v270 = vpack.c.b16 %v267, %v266
      %v271 = vpack.c.b16 %v269, %v268
      %vm274 = vcmask 261120
      %v276 = vsel %vm274, %v260, 0
      %v279 = vsel %vm274, %v261, 0
      %281 = vmatpush.bf16.msra.mxu0 0
      %282 = vmatpush.bf16.msra.mxu0 0
      %283 = vmatpush.bf16.msra.mxu0 0
      %284 = vmatpush.bf16.msra.mxu0 0
      %285 = vmatpush.bf16.msra.mxu0 0
      %286 = vmatpush.bf16.msra.mxu0 0
      %287 = vmatpush.bf16.msra.mxu0 %v271
      %288 = vmatpush.bf16.msra.mxu0 %v270
      %289 = vmatmul.bf16.gmra.mxu0 %v276
      %v290 = vpop.f32.mrf.mxu0
      %v291 = vadd.f32 %v250, %v290
      %v292 = vpop.f32.mrf.mxu0
      %v293 = vadd.f32 %v250, %v292
      %294 = vmatmul.bf16.gmra.mxu0 %v279
      %v295 = vpop.f32.mrf.mxu0
      %v296 = vadd.f32 %v250, %v295
      %v297 = vpop.f32.mrf.mxu0
      %v298 = vadd.f32 %v250, %v297
      %299 = vdwg.mxu0
      %s300 = smul.u32 %s17, 32
      %s301 = scalar_lea.vmem [#allocation2], %s300
      %vm302 = vcmask 523264
      %303 = vst.msk [vmem:[%s301] sm:$0xff] %vm302, %v291
      %304 = vst.msk [vmem:[%s301 + $0x8] sm:$0xff] %vm302, %v293
      %305 = vst.msk [vmem:[%s301 + $0x10] sm:$0xff] %vm302, %v296
      %306 = vst.msk [vmem:[%s301 + $0x18] sm:$0xff] %vm302, %v298
      %p307 = scmp.eq.s32.totalorder %s17, 1
      // Predicated region
      $region45: #{tpu_custom_call.1} parent=43 // pred_check
        %p308 = pneg %p307
      $region46: #{tpu_custom_call.1} parent=43 // pred_check_branch
        %310 = sbr.rel (%p308) target = $region48
      $region47: #{tpu_custom_call.1} parent=43 // pred_region
        %v311 = vld [vmem:[%s2] sm:$0xf]
        %v312 = vld [vmem:[%s2 + $0x4] sm:$0xf]
        %v313 = vld [vmem:[%s2 + $0x8] sm:$0xf]
        %v314 = vld [vmem:[%s2 + $0xc] sm:$0xf]
        %v315 = vld [vmem:[%s2 + $0x10] sm:$0xf]
        %v316 = vld [vmem:[%s2 + $0x14] sm:$0xf]
        %v317 = vld [vmem:[%s2 + $0x18] sm:$0xf]
        %v318 = vld [vmem:[%s2 + $0x1c] sm:$0xf]
        %v319 = vlaneseq
        %v320 = vand.u32 %v319, 127
        %vm321 = vcmp.lt.s32.totalorder %v320, 32
        %v322 = vld [vmem:[#allocation2] sm:$0xff]
        %s323 = scalar_lea.vmem [#allocation2], 56
        %v324 = vld [vmem:[%s323] sm:$0xff]
        %v325 = vsel %vm321, %v322, %v324
        %v334 = vunpack.c.l.b16 %v311
        %v335 = vunpack.c.l.b16 %v312
        %v336 = vunpack.c.l.b16 %v313
        %v337 = vunpack.c.l.b16 %v314
        %v338 = vunpack.c.l.b16 %v315
        %v339 = vunpack.c.l.b16 %v316
        %v340 = vunpack.c.l.b16 %v317
        %v341 = vunpack.c.l.b16 %v318
        %v342 = vpack.c.b16 %v335, %v334
        %v343 = vpack.c.b16 %v337, %v336
        %v344 = vpack.c.b16 %v339, %v338
        %v345 = vpack.c.b16 %v341, %v340
        %v351 = vsel %vm302, 0, 0
        %353 = vmatpush.bf16.msra.mxu0 0
        %354 = vmatpush.bf16.msra.mxu0 0
        %355 = vmatpush.bf16.msra.mxu0 0
        %356 = vmatpush.bf16.msra.mxu0 0
        %357 = vmatpush.bf16.msra.mxu0 %v345
        %358 = vmatpush.bf16.msra.mxu0 %v344
        %359 = vmatpush.bf16.msra.mxu0 %v343
        %360 = vmatpush.bf16.msra.mxu0 %v342
        %361 = vmatmul.bf16.gmra.mxu0 %v351
        %v362 = vpop.f32.mrf.mxu0
        %v363 = vadd.f32 0.0, %v362
        %v364 = vpop.f32.mrf.mxu0
        %365 = vdwg.mxu0
        %v366 = vadd.f32 %v325, %v363
        %v367 = vtanh.pop %v366
        %v368 = vadd.f32 %v367, 0.0
        %s369 = scalar_lea.vmem [#allocation2], 8
        %v370 = vld [vmem:[%s369] sm:$0xff]
        %s371 = scalar_lea.vmem [#allocation2], 48
        %v372 = vld [vmem:[%s371] sm:$0xff]
        %v373 = vsel %vm321, %v370, %v372
        %v374 = vpack.c.bf16 %v367, %v367
        %v376 = vsel %vm302, %v374, 0
        %378 = vmatpush.bf16.msra.mxu0 0
        %379 = vmatpush.bf16.msra.mxu0 0
        %380 = vmatpush.bf16.msra.mxu0 0
        %381 = vmatpush.bf16.msra.mxu0 0
        %382 = vmatpush.bf16.msra.mxu0 %v345
        %383 = vmatpush.bf16.msra.mxu0 %v344
        %384 = vmatpush.bf16.msra.mxu0 %v343
        %385 = vmatpush.bf16.msra.mxu0 %v342
        %386 = vmatmul.bf16.gmra.mxu0 %v376
        %v387 = vpop.f32.mrf.mxu0
        %v388 = vadd.f32 0.0, %v387
        %v389 = vpop.f32.mrf.mxu0
        %390 = vdwg.mxu0
        %v391 = vadd.f32 %v373, %v388
        %v392 = vtanh.pop %v391
        %v393 = vadd.f32 %v368, %v392
        %s394 = scalar_lea.vmem [#allocation2], 16
        %v395 = vld [vmem:[%s394] sm:$0xff]
        %s396 = scalar_lea.vmem [#allocation2], 40
        %v397 = vld [vmem:[%s396] sm:$0xff]
        %v398 = vsel %vm321, %v395, %v397
        %v399 = vpack.c.bf16 %v392, %v392
        %v401 = vsel %vm302, %v399, 0
        %403 = vmatpush.bf16.msra.mxu0 0
        %404 = vmatpush.bf16.msra.mxu0 0
        %405 = vmatpush.bf16.msra.mxu0 0
        %406 = vmatpush.bf16.msra.mxu0 0
        %407 = vmatpush.bf16.msra.mxu0 %v345
        %408 = vmatpush.bf16.msra.mxu0 %v344
        %409 = vmatpush.bf16.msra.mxu0 %v343
        %410 = vmatpush.bf16.msra.mxu0 %v342
        %411 = vmatmul.bf16.gmra.mxu0 %v401
        %v412 = vpop.f32.mrf.mxu0
        %v413 = vadd.f32 0.0, %v412
        %v414 = vpop.f32.mrf.mxu0
        %415 = vdwg.mxu0
        %v416 = vadd.f32 %v398, %v413
        %v417 = vtanh.pop %v416
        %v418 = vadd.f32 %v393, %v417
        %s419 = scalar_lea.vmem [#allocation2], 24
        %v420 = vld [vmem:[%s419] sm:$0xff]
        %s421 = scalar_lea.vmem [#allocation2], 32
        %v422 = vld [vmem:[%s421] sm:$0xff]
        %v423 = vsel %vm321, %v420, %v422
        %v424 = vpack.c.bf16 %v417, %v417
        %v426 = vsel %vm302, %v424, 0
        %428 = vmatpush.bf16.msra.mxu0 0
        %429 = vmatpush.bf16.msra.mxu0 0
        %430 = vmatpush.bf16.msra.mxu0 0
        %431 = vmatpush.bf16.msra.mxu0 0
        %432 = vmatpush.bf16.msra.mxu0 %v345
        %433 = vmatpush.bf16.msra.mxu0 %v344
        %434 = vmatpush.bf16.msra.mxu0 %v343
        %435 = vmatpush.bf16.msra.mxu0 %v342
        %436 = vmatmul.bf16.gmra.mxu0 %v426
        %v437 = vpop.f32.mrf.mxu0
        %v438 = vadd.f32 0.0, %v437
        %v439 = vpop.f32.mrf.mxu0
        %440 = vdwg.mxu0
        %v441 = vadd.f32 %v423, %v438
        %v442 = vtanh.pop %v441
        %v443 = vadd.f32 %v418, %v442
        %v444 = vsel %vm321, %v422, %v420
        %v445 = vpack.c.bf16 %v442, %v442
        %v447 = vsel %vm302, %v445, 0
        %449 = vmatpush.bf16.msra.mxu0 0
        %450 = vmatpush.bf16.msra.mxu0 0
        %451 = vmatpush.bf16.msra.mxu0 0
        %452 = vmatpush.bf16.msra.mxu0 0
        %453 = vmatpush.bf16.msra.mxu0 %v345
        %454 = vmatpush.bf16.msra.mxu0 %v344
        %455 = vmatpush.bf16.msra.mxu0 %v343
        %456 = vmatpush.bf16.msra.mxu0 %v342
        %457 = vmatmul.bf16.gmra.mxu0 %v447
        %v458 = vpop.f32.mrf.mxu0
        %v459 = vadd.f32 0.0, %v458
        %v460 = vpop.f32.mrf.mxu0
        %461 = vdwg.mxu0
        %v462 = vadd.f32 %v444, %v459
        %v463 = vtanh.pop %v462
        %v464 = vadd.f32 %v443, %v463
        %v465 = vsel %vm321, %v397, %v395
        %v466 = vpack.c.bf16 %v463, %v463
        %v468 = vsel %vm302, %v466, 0
        %470 = vmatpush.bf16.msra.mxu0 0
        %471 = vmatpush.bf16.msra.mxu0 0
        %472 = vmatpush.bf16.msra.mxu0 0
        %473 = vmatpush.bf16.msra.mxu0 0
        %474 = vmatpush.bf16.msra.mxu0 %v345
        %475 = vmatpush.bf16.msra.mxu0 %v344
        %476 = vmatpush.bf16.msra.mxu0 %v343
        %477 = vmatpush.bf16.msra.mxu0 %v342
        %478 = vmatmul.bf16.gmra.mxu0 %v468
        %v479 = vpop.f32.mrf.mxu0
        %v480 = vadd.f32 0.0, %v479
        %v481 = vpop.f32.mrf.mxu0
        %482 = vdwg.mxu0
        %v483 = vadd.f32 %v465, %v480
        %v484 = vtanh.pop %v483
        %v485 = vadd.f32 %v464, %v484
        %v486 = vsel %vm321, %v372, %v370
        %v487 = vpack.c.bf16 %v484, %v484
        %v489 = vsel %vm302, %v487, 0
        %491 = vmatpush.bf16.msra.mxu0 0
        %492 = vmatpush.bf16.msra.mxu0 0
        %493 = vmatpush.bf16.msra.mxu0 0
        %494 = vmatpush.bf16.msra.mxu0 0
        %495 = vmatpush.bf16.msra.mxu0 %v345
        %496 = vmatpush.bf16.msra.mxu0 %v344
        %497 = vmatpush.bf16.msra.mxu0 %v343
        %498 = vmatpush.bf16.msra.mxu0 %v342
        %499 = vmatmul.bf16.gmra.mxu0 %v489
        %v500 = vpop.f32.mrf.mxu0
        %v501 = vadd.f32 0.0, %v500
        %v502 = vpop.f32.mrf.mxu0
        %503 = vdwg.mxu0
        %v504 = vadd.f32 %v486, %v501
        %v505 = vtanh.pop %v504
        %v506 = vadd.f32 %v485, %v505
        %v507 = vsel %vm321, %v324, %v322
        %v508 = vpack.c.bf16 %v505, %v505
        %v510 = vsel %vm302, %v508, 0
        %512 = vmatpush.bf16.msra.mxu0 0
        %513 = vmatpush.bf16.msra.mxu0 0
        %514 = vmatpush.bf16.msra.mxu0 0
        %515 = vmatpush.bf16.msra.mxu0 0
        %516 = vmatpush.bf16.msra.mxu0 %v345
        %517 = vmatpush.bf16.msra.mxu0 %v344
        %518 = vmatpush.bf16.msra.mxu0 %v343
        %519 = vmatpush.bf16.msra.mxu0 %v342
        %520 = vmatmul.bf16.gmra.mxu0 %v510
        %v521 = vpop.f32.mrf.mxu0
        %v522 = vadd.f32 0.0, %v521
        %v523 = vpop.f32.mrf.mxu0
        %524 = vdwg.mxu0
        %v525 = vadd.f32 %v507, %v522
        %v526 = vtanh.pop %v525
        %v527 = vadd.f32 %v506, %v526
        %v528 = vpack.c.bf16 %v527, %v527
        %v529 = vld [vmem:[%s4] sm:$0xf]
        %v530 = vld [vmem:[%s4 + $0x4] sm:$0xf]
        %v531 = vld [vmem:[%s4 + $0x8] sm:$0xf]
        %v532 = vld [vmem:[%s4 + $0xc] sm:$0xf]
        %v533 = vld [vmem:[%s4 + $0x10] sm:$0xf]
        %v534 = vld [vmem:[%s4 + $0x14] sm:$0xf]
        %v535 = vld [vmem:[%s4 + $0x18] sm:$0xf]
        %v536 = vld [vmem:[%s4 + $0x1c] sm:$0xf]
        %v537 = vld [vmem:[%s5] sm:$0x1]
        %v539 = vperm.slane %v537, 0
        %v549 = vunpack.c.l.b16 %v529
        %v550 = vunpack.c.l.b16 %v530
        %v551 = vunpack.c.l.b16 %v531
        %v552 = vunpack.c.l.b16 %v532
        %v553 = vunpack.c.l.b16 %v533
        %v554 = vunpack.c.l.b16 %v534
        %v555 = vunpack.c.l.b16 %v535
        %v556 = vunpack.c.l.b16 %v536
        %v557 = vpack.c.b16 %v550, %v549
        %v558 = vpack.c.b16 %v552, %v551
        %v559 = vpack.c.b16 %v554, %v553
        %v560 = vpack.c.b16 %v556, %v555
        %v566 = vsel %vm302, %v528, 0
        %568 = vmatpush.bf16.msra.mxu0 0
        %569 = vmatpush.bf16.msra.mxu0 0
        %570 = vmatpush.bf16.msra.mxu0 0
        %571 = vmatpush.bf16.msra.mxu0 0
        %572 = vmatpush.bf16.msra.mxu0 %v560
        %573 = vmatpush.bf16.msra.mxu0 %v559
        %574 = vmatpush.bf16.msra.mxu0 %v558
        %575 = vmatpush.bf16.msra.mxu0 %v557
        %576 = vmatmul.bf16.gmra.mxu0 %v566
        %v577 = vpop.f32.mrf.mxu0
        %v578 = vadd.f32 %v539, %v577
        %v579 = vpop.f32.mrf.mxu0
        %580 = vdwg.mxu0
        %vm581 = vcmask 23552
        %582 = vst.msk [vmem:[%s6] sm:$0xff] %vm581, %v578
      $region48: #{tpu_custom_call.1} parent=43 // pred_fallthru
        _
      // Predicated region
      $region49: #{tpu_custom_call.1} parent=43 // pred_check
        %p583 = pneg %p161
      $region50: #{tpu_custom_call.1} parent=43 // pred_check_branch
        %585 = sbr.rel (%p583) target = $region52
      $region51: #{tpu_custom_call.1} parent=43 // pred_region
        _
      $region52: #{tpu_custom_call.1} parent=43 // pred_fallthru
        _
      // Predicated region
      $region53: #{tpu_custom_call.1} parent=43 // pred_check
        %p586 = pneg %p161
      $region54: #{tpu_custom_call.1} parent=43 // pred_check_branch
        %588 = sbr.rel (%p586) target = $region56
      $region55: #{tpu_custom_call.1} parent=43 // pred_region
        _
      $region56: #{tpu_custom_call.1} parent=43 // pred_fallthru
        _
    $region44: #{tpu_custom_call.1} parent=5 // pred_fallthru
      _
    %p589 = scmp.le.s32.totalorder 2, %s12
    // Predicated region
    $region57: #{tpu_custom_call.1} parent=5 // pred_check
      %p590 = pneg %p589
    $region58: #{tpu_custom_call.1} parent=5 // pred_check_branch
      %592 = sbr.rel (%p590) target = $region60
    $region59: #{tpu_custom_call.1} parent=5 // pred_region
      %s593 = ssub.s32 %s12, 2
    $region60: #{tpu_custom_call.1} parent=5 // pred_fallthru
      _
  $region6: #{tpu_custom_call.1} parent=0 // loop_footer
    %s16 = sadd.s32 1, %s12
  $region7: #{tpu_custom_call.1} parent=0 // loop_footer_branch
    %11 = sbr.rel target = $region3
  $region8: #{tpu_custom_call.1} parent=0 // loop_exit
    _

</llo_original>
